<compile_context>
chip_gen: v7x
topology: tpu7x:2x2x1
jax: 0.10.0
libtpu: 0.0.40
codegen_flags: <defaults>
</compile_context>

<pallas_src>
import jax
import jax.numpy as jnp
from jax.experimental import pallas as pl
from jax.experimental.pallas import tpu as pltpu


def _round_up(a, m):
    return (a + m - 1) // m * m


# ---------------------------------------------------------------------------
# Kernels
# ---------------------------------------------------------------------------
def _linear_single_kernel(x_ref, w_ref, b_ref, o_ref):
    """Whole problem in one VMEM tile: y = x @ Wt + b (no grid, no scratch)."""
    acc = jnp.dot(x_ref[...], w_ref[...], preferred_element_type=jnp.float32)
    o_ref[...] = (acc + b_ref[...].astype(jnp.float32)).astype(o_ref.dtype)


def _linear_tiled_f32_kernel(x_ref, w_ref, b_ref, o_ref):
    """Tiled GEMM, f32 output: accumulate directly into the resident o_ref."""
    k = pl.program_id(2)

    @pl.when(k == 0)
    def _():
        o_ref[...] = jnp.zeros_like(o_ref)

    o_ref[...] += jnp.dot(
        x_ref[...], w_ref[...], preferred_element_type=jnp.float32
    )

    @pl.when(k == pl.num_programs(2) - 1)
    def _():
        # bias block is (8, tn); only row 0 carries data (static slice, free).
        o_ref[...] += b_ref[0:1, :].astype(jnp.float32)


def _linear_tiled_scratch_kernel(x_ref, w_ref, b_ref, o_ref, acc_ref):
    """Tiled GEMM, non-f32 output: f32 scratch accumulator, cast on finalize."""
    k = pl.program_id(2)

    @pl.when(k == 0)
    def _():
        acc_ref[...] = jnp.zeros_like(acc_ref)

    acc_ref[...] += jnp.dot(
        x_ref[...], w_ref[...], preferred_element_type=jnp.float32
    )

    @pl.when(k == pl.num_programs(2) - 1)
    def _():
        o_ref[...] = (
            acc_ref[...] + b_ref[0:1, :].astype(jnp.float32)
        ).astype(o_ref.dtype)


# ---------------------------------------------------------------------------
# Hardware-dependent tile defaults
# ---------------------------------------------------------------------------
def _hw_tile_defaults():
    """(tm, tn, tk, vmem_limit_bytes) tuned by VMEM capacity.

    v5e/v6e: 128 MiB VMEM -> big tiles, fewer grid steps, W re-streamed less.
    v7x (64 MiB) or unknown: conservative 256-aligned tiles, 32 MiB scoped.
    """
    vmem_cap = None
    try:
        info = pltpu.get_tpu_info()
        vmem_cap = getattr(info, "vmem_capacity_bytes", None)
    except Exception:
        vmem_cap = None
    if vmem_cap is not None and vmem_cap >= 96 * 1024 * 1024:
        return 512, 512, 1024, 64 * 1024 * 1024
    return 256, 256, 512, 32 * 1024 * 1024


# ---------------------------------------------------------------------------
# Classifier wrapper
# ---------------------------------------------------------------------------
class PallasClassifier:
    """Pallas-TPU equivalent of the PyTorch Classifier (one nn.Linear)."""

    # Fast-path thresholds: whole problem fits comfortably in one VMEM tile.
    _FAST_B, _FAST_K, _FAST_N = 256, 1024, 1024

    def __init__(self, weight_t, bias, *, tm=None, tn=None, tk=None,
                 compute_dtype=None, use_fast_path=None):
        K, N = weight_t.shape
        assert bias.shape == (N,), "bias must have shape (size_output,)"
        d_tm, d_tn, d_tk, vmem_limit = _hw_tile_defaults()

        self.size_input = K
        self.size_output = N
        self.compute_dtype = compute_dtype
        self.use_fast_path = use_fast_path
        self.vmem_limit = vmem_limit
        self.tn = min(tn or d_tn, _round_up(N, 128))
        self.tk = min(tk or d_tk, _round_up(K, 128))
        self.tm_cap = tm or d_tm

        wt = weight_t if compute_dtype is None else weight_t.astype(compute_dtype)
        # Unpadded operands for the single-tile fast path (no wrapper copies).
        self.weight_t = wt
        self.bias = bias
        self.bias2d = bias.reshape(1, N)
        # Padded operands for the tiled path are built lazily, exactly once.
        self._padded = None

    def _padded_params(self):
        if self._padded is None:
            K, N = self.size_input, self.size_output
            Kp = _round_up(K, self.tk)
            Np = _round_up(N, self.tn)
            wt = self.weight_t
            if (Kp, Np) != (K, N):
                wp = jnp.zeros((Kp, Np), wt.dtype).at[:K, :N].set(wt)
            else:
                wp = wt
            # Sublane-8 bias block (only row 0 is read inside the kernel).
            bp = jnp.zeros((8, Np), self.bias.dtype).at[:, :N].set(self.bias)
            self._padded = (wp, bp, Kp, Np)
        return self._padded

    def __call__(self, x):
        B, K = x.shape
        assert K == self.size_input, "size_input mismatch"
        N = self.size_output
        out_dtype = x.dtype
        if self.compute_dtype is not None:
            x = x.astype(self.compute_dtype)

        fast = self.use_fast_path
        if fast is None:
            fast = (B <= self._FAST_B and K <= self._FAST_K
                    and N <= self._FAST_N)

        cost = pl.CostEstimate(
            flops=2 * B * K * N,
            bytes_accessed=(B * K + K * N + B * N + N)
            * jnp.dtype(x.dtype).itemsize,
            transcendentals=0,
        )

        if fast:
            # Single-tile fast path: whole arrays as VMEM blocks, no grid,
            # no accumulator, no padding -- dominant win at the toy shapes.
            return pl.pallas_call(
                _linear_single_kernel,
                out_shape=jax.ShapeDtypeStruct((B, N), out_dtype),
                cost_estimate=cost,
            )(x, self.weight_t, self.bias2d)

        # ----------------------------- tiled path ---------------------------
        wp, bp, Kp, Np = self._padded_params()
        tm = min(self.tm_cap, _round_up(B, 8))   # tm = full batch when small
        tn, tk = self.tn, self.tk
        Bp = _round_up(B, tm)

        if (Bp, Kp) != (B, K):
            xp = jnp.zeros((Bp, Kp), x.dtype).at[:B, :K].set(x)
        else:
            xp = x

        grid = (Bp // tm, Np // tn, Kp // tk)

        if out_dtype == jnp.float32:
            kernel = _linear_tiled_f32_kernel
            scratch = []
        else:
            kernel = _linear_tiled_scratch_kernel
            scratch = [pltpu.VMEM((tm, tn), jnp.float32)]

        out = pl.pallas_call(
            kernel,
            out_shape=jax.ShapeDtypeStruct((Bp, Np), out_dtype),
            grid_spec=pltpu.PrefetchScalarGridSpec(
                num_scalar_prefetch=0,
                grid=grid,
                in_specs=[
                    pl.BlockSpec((tm, tk), lambda i, j, k: (i, k)),  # x tile
                    pl.BlockSpec((tk, tn), lambda i, j, k: (k, j)),  # W tile
                    pl.BlockSpec((8, tn), lambda i, j, k: (0, j)),   # bias
                ],
                out_specs=pl.BlockSpec((tm, tn), lambda i, j, k: (i, j)),
                scratch_shapes=scratch,
            ),
            compiler_params=pltpu.CompilerParams(
                dimension_semantics=("parallel", "parallel", "arbitrary"),
                vmem_limit_bytes=self.vmem_limit,
            ),
            cost_estimate=cost,
        )(xp, wp, bp)

        if (Bp, Np) != (B, N):
            out = out[:B, :N]
        return out


def init_classifier_params(key, size_input, size_output, dtype=jnp.float32):
    """nn.Linear-style init (uniform +-1/sqrt(fan_in)); weight stored as (in, out)."""
    k_w, k_b = jax.random.split(key)
    bound = 1.0 / (size_input ** 0.5)
    weight_t = jax.random.uniform(
        k_w, (size_input, size_output), dtype=dtype, minval=-bound, maxval=bound
    )
    bias = jax.random.uniform(
        k_b, (size_output,), dtype=dtype, minval=-bound, maxval=bound
    )
    return weight_t, bias


if __name__ == "__main__":
    key = jax.random.PRNGKey(0)
    k_x1, k_p1, k_x2, k_p2, k_x3, k_p3 = jax.random.split(key, 6)

    # 1) Toy shapes of the module -> single-tile fast path (no grid, no pad).
    size_input, size_output, batch = 32, 16, 8
    x1 = jax.random.normal(k_x1, (batch, size_input), dtype=jnp.float32)
    w1, b1 = init_classifier_params(k_p1, size_input, size_output)
    clf1 = PallasClassifier(w1, b1)
    y1 = jax.block_until_ready(clf1(x1))
    ref1 = x1 @ w1 + b1
    assert y1.shape == (batch, size_output)
    assert jnp.allclose(y1, ref1, atol=1e-5, rtol=1e-5)

    # 2) Non-aligned shapes, still within the fast-path budget.
    si2, so2, bs2 = 384, 200, 20
    x2 = jax.random.normal(k_x2, (bs2, si2), dtype=jnp.float32)
    w2, bias2 = init_classifier_params(k_p2, si2, so2)
    clf2 = PallasClassifier(w2, bias2)
    y2 = jax.block_until_ready(clf2(x2))
    ref2 = x2 @ w2 + bias2
    assert y2.shape == (bs2, so2)
    assert jnp.allclose(y2, ref2, atol=1e-4, rtol=1e-4)

    # 3) Force the tiled GEMM path (K-reduction axis, in-place f32 accumulate).
    si3, so3, bs3 = 512, 384, 64
    x3 = jax.random.normal(k_x3, (bs3, si3), dtype=jnp.float32)
    w3, bias3 = init_classifier_params(k_p3, si3, so3)
    clf3 = PallasClassifier(w3, bias3, tm=64, tn=128, tk=256,
                            use_fast_path=False)
    y3 = jax.block_until_ready(clf3(x3))
    ref3 = x3 @ w3 + bias3
    assert y3.shape == (bs3, so3)
    assert jnp.allclose(y3, ref3, atol=1e-4, rtol=1e-4)

    print("KERNEL_OK")
</pallas_src>

<mosaic_0001>
module attributes {stable_mosaic.version = 11 : i64} {
  func.func @_linear_single_kernel(%arg0: memref<8x32xf32, #tpu.memory_space<vmem>>, %arg1: memref<32x16xf32, #tpu.memory_space<vmem>>, %arg2: memref<1x16xf32, #tpu.memory_space<vmem>>, %arg3: memref<8x16xf32, #tpu.memory_space<vmem>>) attributes {dimension_semantics = [], scalar_prefetch = 0 : i64, scratch_operands = 0 : i64, tpu.core_type = #tpu.core_type<tc>} {
    %c0 = arith.constant 0 : index
    %c0_0 = arith.constant 0 : index
    %0 = vector.load %arg0[%c0, %c0_0] : memref<8x32xf32, #tpu.memory_space<vmem>>, vector<8x32xf32>
    %c0_1 = arith.constant 0 : index
    %c0_2 = arith.constant 0 : index
    %1 = vector.load %arg1[%c0_1, %c0_2] : memref<32x16xf32, #tpu.memory_space<vmem>>, vector<32x16xf32>
    %cst = arith.constant dense<0.000000e+00> : vector<8x16xf32>
    %2 = tpu.matmul %0, %1, %cst {dimension_numbers = #tpu.dot_dimension_numbers<[1], [0], [0], [1], [0, 0, 1, 1], [], []>} : vector<8x32xf32>, vector<32x16xf32>, vector<8x16xf32> -> vector<8x16xf32>
    %c0_3 = arith.constant 0 : index
    %c0_4 = arith.constant 0 : index
    %3 = vector.load %arg2[%c0_3, %c0_4] : memref<1x16xf32, #tpu.memory_space<vmem>>, vector<1x16xf32>
    %4 = vector.broadcast %3 : vector<1x16xf32> to vector<8x16xf32>
    %5 = arith.addf %2, %4 : vector<8x16xf32>
    %c0_5 = arith.constant 0 : index
    %c0_6 = arith.constant 0 : index
    %6 = vector.load %arg3[%c0_5, %c0_6] : memref<8x16xf32, #tpu.memory_space<vmem>>, vector<8x16xf32>
    tpu.vector_store %arg3[%c0_5, %c0_6], %5 {strides = array<i32>} : memref<8x16xf32, #tpu.memory_space<vmem>>, vector<8x16xf32>,
    return
  }
}

</mosaic_0001>

<llo_original>
// kernel: tpu_custom_call.1
$region0: #{tpu_custom_call.1}
  #allocation0 [shape = 'u32[]', space=smem, size = 0x4, offset = 0x4, fixed_abs, tag = 'smem constant byte address 0x4 - core index']
  #allocation1 [shape = 'u32[144,128]{1,0:T(1,128)}', space=vmem, size = 0x12000, scoped, tag = 'internal scratch']
  %s0 = inlined_call_operand.vmem [shape: f32[8,32], index: 0, kind: input, shape index: {}]
  %s1 = inlined_call_operand.vmem [shape: f32[32,16], index: 1, kind: input, shape index: {}]
  %s2 = inlined_call_operand.vmem [shape: f32[1,16], index: 2, kind: input, shape index: {}]
  %s3 = inlined_call_operand.hbm [shape: f32[8,16], index: 3, kind: output, shape index: {}]
  %s4 = sld [smem:[#allocation0]]
  $region22: #{tpu_custom_call.1} parent=0
    _
  %s6 = ssub.s32 1, %s4
  %s7 = scalar_select 0, %s6, %s4
  $region1: #{tpu_custom_call.1} parent=0
    #allocation2 [shape = 'u8[4096]{0}', space=vmem, size = 0x1000, scoped, tag = 'output window, operand 0, single buffered']
    #allocation3 [shape = 's32[1]{0}', space=sflag, size = 0x4, scoped, tag = 'scoped memory for tpu_custom_call.1']
    %8 = vsyncpa [#allocation3], 0
    // Predicated region
    $region2: #{tpu_custom_call.1} parent=1 // pred_check
      _
    $region3: #{tpu_custom_call.1} parent=1 // pred_check_branch
      %10 = sbr.rel (0) target = $region5
    $region4: #{tpu_custom_call.1} parent=1 // pred_region
      _
    $region5: #{tpu_custom_call.1} parent=1 // pred_fallthru
      _
    // Predicated region
    $region6: #{tpu_custom_call.1} parent=1 // pred_check
      _
    $region7: #{tpu_custom_call.1} parent=1 // pred_check_branch
      %12 = sbr.rel (0) target = $region9
    $region8: #{tpu_custom_call.1} parent=1 // pred_region
      _
    $region9: #{tpu_custom_call.1} parent=1 // pred_fallthru
      _
    // Predicated region
    $region10: #{tpu_custom_call.1} parent=1 // pred_check
      _
    $region11: #{tpu_custom_call.1} parent=1 // pred_check_branch
      %14 = sbr.rel (0) target = $region13
    $region12: #{tpu_custom_call.1} parent=1 // pred_region
      _
    $region13: #{tpu_custom_call.1} parent=1 // pred_fallthru
      _
    %v15 = vld [vmem:[%s0] sm:$0xff]
    %v16 = vld [vmem:[%s1] sm:$0xff]
    %v17 = vld [vmem:[%s1 + $0x8] sm:$0xff]
    %v18 = vld [vmem:[%s1 + $0x10] sm:$0xff]
    %v19 = vld [vmem:[%s1 + $0x18] sm:$0xff]
    %v20 = vld [vmem:[%s2] sm:$0x1]
    %v22 = vlaneseq
    %v23 = vshrl.u32 %v22, 7
    %v24 = vsub.s32 0, %v23
    %v25 = vrot.slane %v20, %v24
    %vm27 = vcmask 261120
    %v29 = vsel %vm27, %v15, 0
    %31 = vmatprep.subr.mxu0 0.0
    %32 = vmatpush1.msra.mxu0 %v16
    %33 = vmatprep.subr.mxu0 0.0
    %34 = vmatpush1.msra.mxu0 %v17
    %35 = vmatprep.subr.mxu0 0.0
    %36 = vmatpush1.msra.mxu0 %v18
    %37 = vmatprep.subr.mxu0 0.0
    %38 = vmatpush1.msra.mxu0 %v19
    %39 = vmatprep.subr.mxu0 0.0
    %40 = vmatpush1.msra.mxu0 0.0
    %41 = vmatprep.subr.mxu0 0.0
    %42 = vmatpush1.msra.mxu0 0.0
    %43 = vmatprep.subr.mxu0 0.0
    %44 = vmatpush1.msra.mxu0 0.0
    %45 = vmatprep.subr.mxu0 0.0
    %46 = vmatpush1.msra.mxu0 0.0
    %47 = vmatprep.subr.mxu0 0.0
    %48 = vmatpush1.msra.mxu0 0.0
    %49 = vmatprep.subr.mxu0 0.0
    %50 = vmatpush1.msra.mxu0 0.0
    %51 = vmatprep.subr.mxu0 0.0
    %52 = vmatpush1.msra.mxu0 0.0
    %53 = vmatprep.subr.mxu0 0.0
    %54 = vmatpush1.msra.mxu0 0.0
    %55 = vmatprep.subr.mxu0 0.0
    %56 = vmatpush1.msra.mxu0 0.0
    %57 = vmatprep.subr.mxu0 0.0
    %58 = vmatpush1.msra.mxu0 0.0
    %59 = vmatprep.subr.mxu0 0.0
    %60 = vmatpush1.msra.mxu0 0.0
    %61 = vmatprep.subr.mxu0 0.0
    %62 = vmatpush1.msra.mxu0 0.0
    %63 = vmatprep.subr.mxu0 0.0
    %64 = vmatpush1.msra.mxu0 0.0
    %65 = vmatprep.subr.mxu0 0.0
    %66 = vmatpush1.msra.mxu0 0.0
    %67 = vmatprep.subr.mxu0 0.0
    %68 = vmatpush1.msra.mxu0 0.0
    %69 = vmatprep.subr.mxu0 0.0
    %70 = vmatpush1.msra.mxu0 0.0
    %71 = vmatprep.subr.mxu0 0.0
    %72 = vmatpush1.msra.mxu0 0.0
    %73 = vmatprep.subr.mxu0 0.0
    %74 = vmatpush1.msra.mxu0 0.0
    %75 = vmatprep.subr.mxu0 0.0
    %76 = vmatpush1.msra.mxu0 0.0
    %77 = vmatprep.subr.mxu0 0.0
    %78 = vmatpush1.msra.mxu0 0.0
    %79 = vmatprep.subr.mxu0 0.0
    %80 = vmatpush1.msra.mxu0 0.0
    %81 = vmatprep.subr.mxu0 0.0
    %82 = vmatpush1.msra.mxu0 0.0
    %83 = vmatprep.subr.mxu0 0.0
    %84 = vmatpush1.msra.mxu0 0.0
    %85 = vmatprep.subr.mxu0 0.0
    %86 = vmatpush1.msra.mxu0 0.0
    %87 = vmatprep.subr.mxu0 0.0
    %88 = vmatpush1.msra.mxu0 0.0
    %89 = vmatprep.subr.mxu0 0.0
    %90 = vmatpush1.msra.mxu0 0.0
    %91 = vmatprep.subr.mxu0 0.0
    %92 = vmatpush1.msra.mxu0 0.0
    %93 = vmatprep.subr.mxu0 0.0
    %94 = vmatpush1.msra.mxu0 0.0
    %95 = vmatprep.mubr.f32.mxu0 0.0
    %96 = vmatmul.mubr.f32.gmra.mrb[0].mxu0 %v29
    %v97 = vpop.f32.mrb[0].mxu0
    %v98 = vadd.f32 %v25, %v97
    %v99 = vpop.f32.mrb[0].mxu0
    %100 = vdwg.mxu0
    %vm101 = vcmask 130048
    %102 = vst.msk [vmem:[#allocation2] sm:$0xff] %vm101, %v98
    // Predicated region
    $region14: #{tpu_custom_call.1} parent=1 // pred_check
      _
    $region15: #{tpu_custom_call.1} parent=1 // pred_check_branch
      %104 = sbr.rel (0) target = $region17
    $region16: #{tpu_custom_call.1} parent=1 // pred_region
      %s106 = ssub.s32 128, 128
      %107 = vsyncadd [#allocation3], %s106
      %s109 = sshll.u32 [#allocation2], 4
      %s110 = int_to_ptr.vmem [resolvable:$true] %s109
      %112 = dma.vmem_to_hbm [thread:$0]  %s110, 128, %s3, [#allocation3]
    $region17: #{tpu_custom_call.1} parent=1 // pred_fallthru
      _
    // Predicated region
    $region18: #{tpu_custom_call.1} parent=1 // pred_check
      _
    $region19: #{tpu_custom_call.1} parent=1 // pred_check_branch
      %114 = sbr.rel (0) target = $region21
    $region20: #{tpu_custom_call.1} parent=1 // pred_region
      %115 = dma.done [#allocation3], 128
    $region21: #{tpu_custom_call.1} parent=1 // pred_fallthru
      _
    %116 = vsyncpa [#allocation3], 1

</llo_original>
